<compile_context>
chip_gen: v6e
topology: v6e:2x2x1
jax: 0.10.0
libtpu: 0.0.40
codegen_flags: <defaults>
</compile_context>

<pallas_src>
import functools
import math

import numpy as np
import jax
import jax.numpy as jnp
from jax.experimental import pallas as pl
from jax.experimental.pallas import tpu as pltpu


def _round_up(a, b):
    return -(-a // b) * b


def _pick_blocking(M, W, itemsize, lane_cap=256, block_bytes_budget=8 * 1024 * 1024):
    """Choose (g, M_pad, mrows, mblk).

    g     : consecutive input rows grouped into one kernel row so the output row width
            g*4W is a multiple of 128 (lane-dense stores).  Widened only while the width
            stays <= lane_cap, keeping K = g*W small enough that the selection matmul
            stays hidden under HBM traffic on v5e / v7x.
    M_pad : M rounded up to a multiple of g (zero row padding; rare).
    mblk  : rows per grid step; a multiple of the dtype's packed sublane tile, sized so
            the double-buffered in+out blocks fit block_bytes_budget, with >=2 (and
            preferably an even number of) grid steps for 2-TensorCore chips.
    """
    sub = {4: 8, 2: 16, 1: 32}.get(itemsize, 8)   # packed sublane tile per dtype

    g = 128 // math.gcd(4 * W, 128)
    while 4 * W * (2 * g) <= lane_cap:
        g *= 2

    M_pad = _round_up(M, g)
    mrows = M_pad // g

    if mrows <= sub:
        return g, M_pad, mrows, mrows              # single full-extent block

    row_bytes = 5 * W * g * itemsize               # in (W) + out (4W) per grouped row
    nsteps = max(2, -(-(2 * mrows * row_bytes) // block_bytes_budget))
    if nsteps % 2:                                 # even split across 2 TensorCores
        nsteps += 1
    mblk = _round_up(-(-mrows // nsteps), sub)
    mblk = max(sub, min(mblk, (mrows // sub) * sub))
    return g, M_pad, mrows, mblk


def _upsample_zeropad_kernel(k_ref, x_ref, s_ref, o_ref, *, precision):
    # k_ref: (1,) f32 in SMEM; x_ref: (mblk, gW); s_ref: (gW, g4W) constant 0/1 (resident);
    # o_ref: (mblk, g4W).  The dot is a pure selection (one nonzero per output column);
    # the scalar k multiply rides in idle VALU slots of this mem-bound kernel.
    acc = jnp.dot(x_ref[...], s_ref[...],
                  preferred_element_type=jnp.float32, precision=precision)
    o_ref[...] = (acc * k_ref[0]).astype(o_ref.dtype)


def upsample_zeropadding_2d(x, k):
    """x: (B, C, H, W); k: the module's frozen 1x1 conv_transpose weight (single value)."""
    B, C, H, W = x.shape
    # TODO(synk): H == 1 or W == 1 makes the reflect pads differ from pure zero-stuffing;
    # this kernel requires H, W >= 2 (asserted so callers cannot hit it silently).
    assert H >= 2 and W >= 2, "requires H, W >= 2"

    itemsize = jnp.dtype(x.dtype).itemsize
    M = B * C * H
    g, M_pad, mrows, mblk = _pick_blocking(M, W, itemsize)
    gW, g4W = g * W, 4 * g * W
    nsteps = pl.cdiv(mrows, mblk)                  # partial last block handled by Pallas

    # Constant 0/1 selection matrix, built host-side (numpy):  S[s*W + j, s*4W + 2j] = 1.
    a = np.arange(gW)
    tgt = (a // W) * (4 * W) + 2 * (a % W)
    S = np.asarray(np.arange(g4W)[None, :] == tgt[:, None], dtype=x.dtype)

    k_arr = jnp.asarray(k, jnp.float32).reshape(-1)[:1]     # (1,) scalar -> SMEM

    x_rows = x.reshape(M, W)
    if M_pad != M:            # rare: pad rows so they group evenly; sliced off below
        x_rows = jnp.pad(x_rows, ((0, M_pad - M), (0, 0)))
    x2 = x_rows.reshape(mrows, gW)                 # free row-major reshape (common path)

    # f32 selection must be exact (output == k * x); bf16/int inputs are already exact
    # on the native MXU path, so only f32 pays for extra passes (still hidden: K <= 64).
    precision = (jax.lax.Precision.HIGHEST
                 if jnp.issubdtype(x.dtype, jnp.floating) and itemsize >= 4 else None)

    # 2x (in + out) double-buffered blocks + 2x resident S, with headroom; safe on all
    # generations (>= default scoped limit, well under 64 MiB physical on v7x).
    vmem_need = (2 * mblk * (gW + g4W) + 2 * gW * g4W) * itemsize
    vmem_limit = int(min(48 * 1024 * 1024, max(32 * 1024 * 1024, 2 * vmem_need)))

    cost = pl.CostEstimate(
        flops=2 * mrows * gW * g4W,
        bytes_accessed=(mrows * (gW + g4W) + gW * g4W) * itemsize + 4,
        transcendentals=0,
    )

    out2 = pl.pallas_call(
        functools.partial(_upsample_zeropad_kernel, precision=precision),
        out_shape=jax.ShapeDtypeStruct((mrows, g4W), x.dtype),
        grid=(nsteps,),
        in_specs=[
            pl.BlockSpec(memory_space=pltpu.MemorySpace.SMEM),   # k scalar
            pl.BlockSpec((mblk, gW), lambda i: (i, 0)),          # x row-block
            pl.BlockSpec((gW, g4W), lambda i: (0, 0)),           # constant S, stays resident
        ],
        out_specs=pl.BlockSpec((mblk, g4W), lambda i: (i, 0)),
        compiler_params=pltpu.CompilerParams(
            dimension_semantics=("parallel",),
            vmem_limit_bytes=vmem_limit,
        ),
        cost_estimate=cost,
    )(k_arr, x2, S)

    out_rows = out2.reshape(M_pad, 4 * W)
    if M_pad != M:
        out_rows = out_rows[:M]
    return out_rows.reshape(B, C, 2 * H, 2 * W)


if __name__ == "__main__":
    key = jax.random.PRNGKey(0)
    # Module's frozen parameter from __init__: k = [[[[1.]]]].
    k = jnp.ones((1, 1, 1, 1), dtype=jnp.float32)

    # Primary, module-consistent shape: aligned fast path (no padding), 2 grid steps.
    x = jax.random.normal(key, (2, 4, 16, 16), dtype=jnp.float32)
    out = jax.block_until_ready(upsample_zeropadding_2d(x, k))
    ref = jnp.zeros((2, 4, 32, 32), jnp.float32).at[:, :, ::2, ::2].set(x)
    assert out.shape == ref.shape, out.shape
    assert out.dtype == x.dtype, out.dtype
    assert jnp.allclose(out, ref, atol=1e-6), "mismatch vs reference (aligned path)"

    # Non-divisible row count: exercises row padding + a partial last grid block.
    x2 = jax.random.normal(jax.random.PRNGKey(0), (1, 1, 33, 16), dtype=jnp.float32)
    out2 = jax.block_until_ready(upsample_zeropadding_2d(x2, k))
    ref2 = jnp.zeros((1, 1, 66, 32), jnp.float32).at[:, :, ::2, ::2].set(x2)
    assert out2.shape == ref2.shape, out2.shape
    assert jnp.allclose(out2, ref2, atol=1e-6), "mismatch vs reference (padded path)"

    print("KERNEL_OK")
</pallas_src>

<mosaic_0001>
module attributes {stable_mosaic.version = 11 : i64} {
  func.func @_upsample_zeropad_kernel(%arg0: i32, %arg1: memref<1xf32, #tpu.memory_space<smem>>, %arg2: memref<16x64xf32, #tpu.memory_space<vmem>>, %arg3: memref<64x256xf32, #tpu.memory_space<vmem>>, %arg4: memref<16x256xf32, #tpu.memory_space<vmem>>) attributes {dimension_semantics = [#tpu.dimension_semantics<parallel>], iteration_bounds = array<i64: 2>, scalar_prefetch = 0 : i64, scratch_operands = 0 : i64, tpu.core_type = #tpu.core_type<tc>, window_params = [{transform_indices = @transform_0, window_bounds = array<i64: 1>}, {transform_indices = @transform_1, window_bounds = array<i64: 16, 64>}, {pipeline_mode = #tpu.pipeline_mode<synchronous>, transform_indices = @transform_2, window_bounds = array<i64: 64, 256>}, {transform_indices = @transform_3, window_bounds = array<i64: 16, 256>}]} {
    %c0 = arith.constant 0 : index
    %c0_0 = arith.constant 0 : index
    %0 = vector.load %arg2[%c0, %c0_0] : memref<16x64xf32, #tpu.memory_space<vmem>>, vector<16x64xf32>
    %c0_1 = arith.constant 0 : index
    %c0_2 = arith.constant 0 : index
    %1 = vector.load %arg3[%c0_1, %c0_2] : memref<64x256xf32, #tpu.memory_space<vmem>>, vector<64x256xf32>
    %cst = arith.constant dense<0.000000e+00> : vector<16x256xf32>
    %2 = tpu.matmul %0, %1, %cst {dimension_numbers = #tpu.dot_dimension_numbers<[1], [0], [0], [1], [0, 0, 1, 1], [], []>, precision = #tpu.contract_precision<fp32>} : vector<16x64xf32>, vector<64x256xf32>, vector<16x256xf32> -> vector<16x256xf32>
    %c0_3 = arith.constant 0 : index
    %3 = memref.load %arg1[%c0_3] : memref<1xf32, #tpu.memory_space<smem>>
    %4 = vector.broadcast %3 : f32 to vector<16x256xf32>
    %5 = arith.mulf %2, %4 : vector<16x256xf32>
    %c0_4 = arith.constant 0 : index
    %c0_5 = arith.constant 0 : index
    %6 = vector.load %arg4[%c0_4, %c0_5] : memref<16x256xf32, #tpu.memory_space<vmem>>, vector<16x256xf32>
    tpu.vector_store %arg4[%c0_4, %c0_5], %5 {strides = array<i32>} : memref<16x256xf32, #tpu.memory_space<vmem>>, vector<16x256xf32>,
    return
  }
  func.func @transform_0(%arg0: i32) -> i32 {
    %c0_i32 = arith.constant 0 : i32
    %c0_i32_0 = arith.constant 0 : i32
    return %c0_i32 : i32
  }
  func.func @transform_1(%arg0: i32) -> (i32, i32) {
    %c0_i32 = arith.constant 0 : i32
    %c0_i32_0 = arith.constant 0 : i32
    return %arg0, %c0_i32 : i32, i32
  }
  func.func @transform_2(%arg0: i32) -> (i32, i32) {
    %c0_i32 = arith.constant 0 : i32
    %c0_i32_0 = arith.constant 0 : i32
    %c0_i32_1 = arith.constant 0 : i32
    return %c0_i32, %c0_i32_0 : i32, i32
  }
  func.func @transform_3(%arg0: i32) -> (i32, i32) {
    %c0_i32 = arith.constant 0 : i32
    %c0_i32_0 = arith.constant 0 : i32
    return %arg0, %c0_i32 : i32, i32
  }
}

</mosaic_0001>

<llo_original>
// kernel: tpu_custom_call.1
$region0: #{tpu_custom_call.1}
  #allocation0 [shape = 'u32[]', space=smem, size = 0x4, offset = 0x4, fixed_abs, tag = 'smem constant byte address 0x4 - core index']
  #allocation1 [shape = 'u32[144,128]{1,0:T(1,128)}', space=vmem, size = 0x12000, scoped, tag = 'internal scratch']
  #allocation2 [shape = 'f32[1]{0:T(128)S(6)}', space=smem, size = 0x200, scoped, tag = 'scoped memory for tpu_custom_call.1']
  %s0 = inlined_call_operand.<no memory space> [shape: f32[1], index: 0, kind: input, shape index: {}]
  %s1 = inlined_call_operand.hbm [shape: f32[32,64], index: 1, kind: input, shape index: {}]
  %s2 = inlined_call_operand.hbm [shape: f32[64,256], index: 2, kind: input, shape index: {}]
  %s3 = inlined_call_operand.hbm [shape: f32[32,256], index: 3, kind: output, shape index: {}]
  %s4 = sld [smem:[#allocation0]]
  $region53: #{tpu_custom_call.1} parent=0
    _
  %s6 = ssub.s32 1, %s4
  %s7 = scalar_select 0, %s6, %s4
  %8 = sst [smem:[#allocation2]] %s0
  $region1: #{tpu_custom_call.1} parent=0
    #allocation3 [shape = 'u8[16384]{0}', space=vmem, size = 0x4000, scoped, tag = 'input window, operand 1']
    #allocation4 [shape = 's32[2]{0}', space=sflag, size = 0x8, scoped, tag = 'scoped memory for tpu_custom_call.1']
    #allocation5 [shape = 's32[2]{0}', space=sflag, size = 0x8, scoped, tag = 'scoped memory for tpu_custom_call.1']
    #allocation6 [shape = 'u8[65536]{0}', space=vmem, size = 0x10000, scoped, tag = 'input window, operand 2, single buffered']
    #allocation7 [shape = 's32[1]{0}', space=sflag, size = 0x4, scoped, tag = 'scoped memory for tpu_custom_call.1']
    #allocation8 [shape = 'u8[32768]{0}', space=vmem, size = 0x8000, scoped, tag = 'output window, operand 0']
    %9 = vsyncpa [#allocation4], 0
    %s10 = scalar_lea.sflag [#allocation4], 1
    %11 = vsyncpa %s10, 0
    %12 = vsyncpa [#allocation7], 0
    %13 = vsyncpa [#allocation5], 0
    %s14 = scalar_lea.sflag [#allocation5], 1
    %15 = vsyncpa %s14, 0
    loop: start=0, step=1, limit=4
    $region2: #{tpu_custom_call.1} parent=1 // loop_pre_header
      _
    $region3: #{tpu_custom_call.1} parent=1 // loop_header
      %s17 = sphi 0, %s21
      %p18 = scmp.ge.s32.totalorder %s17, 4
      %s25 = sphi 0, %s25
      %s27 = sphi 0, %s25
      %s28 = sphi 0, %s27
      %s42 = sphi 0, %s28
      %s48 = sphi 0, %s50
      %s51 = sphi 0, %s48
      %s52 = sphi 0, %s51
      %s68 = sphi 0, %s52
      %s72 = sphi 0, %s72
      %s74 = sphi 0, %s72
      %s75 = sphi 0, %s74
      %s89 = sphi 0, %s75
      %s95 = sphi 0, %s97
      %s98 = sphi 0, %s95
      %s99 = sphi 0, %s98
      %s115 = sphi 0, %s99
    $region4: #{tpu_custom_call.1} parent=1 // loop_header_branch
      %20 = sbr.rel (%p18) target = $region8
    $region5: #{tpu_custom_call.1} parent=1 // loop_body
      %s22 = ssub.s32 %s17, 1
      %s23 = ssub.s32 %s17, 2
      %s24 = sadd.s32 %s17, 1
      %s26 = sadd.s32 %s25, 1
      %p29 = scmp.eq.s32.totalorder %s17, 1
      %p30 = scmp.ne.s32.totalorder %s25, %s27
      %p31 = scmp.eq.s32.totalorder %s17, 0
      %p32 = por %p30, %p31
      %p33 = scmp.ne.s32.totalorder %s25, %s27
      %p34 = scmp.eq.s32.totalorder %s22, 1
      %p35 = por %p33, %p34
      %p36 = scmp.ne.s32.totalorder %s27, %s28
      %p37 = scmp.eq.s32.totalorder %s22, 0
      %p38 = por %p36, %p37
      %p39 = scmp.ne.s32.totalorder %s27, %s28
      %p40 = scmp.eq.s32.totalorder %s23, 1
      %p41 = por %p39, %p40
      %p43 = scmp.ne.s32.totalorder %s28, %s42
      %p44 = scmp.eq.s32.totalorder %s23, 0
      %p45 = por %p43, %p44
      %s46 = ssub.s32 %s17, %s24
      %p47 = scmp.eq.s32.totalorder %s46, 0
      %s49 = sadd.s32 %s48, 1
      %s50 = scalar_select %p47, %s48, %s49
      %p53 = pneg %p47
      %p54 = scmp.eq.s32.totalorder %s17, 1
      %p55 = por %p53, %p54
      %p56 = scmp.ne.s32.totalorder %s48, %s51
      %p57 = scmp.eq.s32.totalorder %s17, 0
      %p58 = por %p56, %p57
      %p59 = scmp.ne.s32.totalorder %s48, %s51
      %p60 = scmp.eq.s32.totalorder %s22, 1
      %p61 = por %p59, %p60
      %p62 = scmp.ne.s32.totalorder %s51, %s52
      %p63 = scmp.eq.s32.totalorder %s22, 0
      %p64 = por %p62, %p63
      %p65 = scmp.ne.s32.totalorder %s51, %s52
      %p66 = scmp.eq.s32.totalorder %s23, 1
      %p67 = por %p65, %p66
      %p69 = scmp.ne.s32.totalorder %s52, %s68
      %p70 = scmp.eq.s32.totalorder %s23, 0
      %p71 = por %p69, %p70
      %s73 = sadd.s32 %s72, 1
      %p76 = scmp.eq.s32.totalorder %s17, 1
      %p77 = scmp.ne.s32.totalorder %s72, %s74
      %p78 = scmp.eq.s32.totalorder %s17, 0
      %p79 = por %p77, %p78
      %p80 = scmp.ne.s32.totalorder %s72, %s74
      %p81 = scmp.eq.s32.totalorder %s22, 1
      %p82 = por %p80, %p81
      %p83 = scmp.ne.s32.totalorder %s74, %s75
      %p84 = scmp.eq.s32.totalorder %s22, 0
      %p85 = por %p83, %p84
      %p86 = scmp.ne.s32.totalorder %s74, %s75
      %p87 = scmp.eq.s32.totalorder %s23, 1
      %p88 = por %p86, %p87
      %p90 = scmp.ne.s32.totalorder %s75, %s89
      %p91 = scmp.eq.s32.totalorder %s23, 0
      %p92 = por %p90, %p91
      %s93 = ssub.s32 %s17, %s24
      %p94 = scmp.eq.s32.totalorder %s93, 0
      %s96 = sadd.s32 %s95, 1
      %s97 = scalar_select %p94, %s95, %s96
      %p100 = pneg %p94
      %p101 = scmp.eq.s32.totalorder %s17, 1
      %p102 = por %p100, %p101
      %p103 = scmp.ne.s32.totalorder %s95, %s98
      %p104 = scmp.eq.s32.totalorder %s17, 0
      %p105 = por %p103, %p104
      %p106 = scmp.ne.s32.totalorder %s95, %s98
      %p107 = scmp.eq.s32.totalorder %s22, 1
      %p108 = por %p106, %p107
      %p109 = scmp.ne.s32.totalorder %s98, %s99
      %p110 = scmp.eq.s32.totalorder %s22, 0
      %p111 = por %p109, %p110
      %p112 = scmp.ne.s32.totalorder %s98, %s99
      %p113 = scmp.eq.s32.totalorder %s23, 1
      %p114 = por %p112, %p113
      %p116 = scmp.ne.s32.totalorder %s99, %s115
      %p117 = scmp.eq.s32.totalorder %s23, 0
      %p118 = por %p116, %p117
      %p119 = scmp.le.s32.totalorder 1, %s17
      %p120 = scmp.lt.s32.totalorder %s17, 3
      %p121 = pnand %p119, %p120
      %p122 = pneg %p121
      // Predicated region
      $region9: #{tpu_custom_call.1} parent=5 // pred_check
        _
      $region10: #{tpu_custom_call.1} parent=5 // pred_check_branch
        %124 = sbr.rel (%p121) target = $region12
      $region11: #{tpu_custom_call.1} parent=5 // pred_region
        %s125 = ssub.s32 %s17, 1
        // Predicated region
        $region13: #{tpu_custom_call.1} parent=11 // pred_check
          %p126 = pneg %p38
        $region14: #{tpu_custom_call.1} parent=11 // pred_check_branch
          %128 = sbr.rel (%p126) target = $region16
        $region15: #{tpu_custom_call.1} parent=11 // pred_region
          _
        $region16: #{tpu_custom_call.1} parent=11 // pred_fallthru
          _
        // Predicated region
        $region17: #{tpu_custom_call.1} parent=11 // pred_check
          %p129 = pneg %p85
        $region18: #{tpu_custom_call.1} parent=11 // pred_check_branch
          %131 = sbr.rel (%p129) target = $region20
        $region19: #{tpu_custom_call.1} parent=11 // pred_region
          %s133 = ssub.s32 2048, 2048
          %134 = vsyncadd [#allocation7], %s133
          %s135 = sshll.u32 [#allocation6], 4
          %s136 = int_to_ptr.vmem [resolvable:$true] %s135
          %141 = dma.hbm_to_vmem [thread:$0]  %s2, 2048, %s136, [#allocation7], 256, 256, 16
        $region20: #{tpu_custom_call.1} parent=11 // pred_fallthru
          _
      $region12: #{tpu_custom_call.1} parent=5 // pred_fallthru
        _
      %p142 = scmp.lt.s32.totalorder %s17, 2
      // Predicated region
      $region21: #{tpu_custom_call.1} parent=5 // pred_check
        %p143 = pneg %p142
      $region22: #{tpu_custom_call.1} parent=5 // pred_check_branch
        %145 = sbr.rel (%p143) target = $region24
      $region23: #{tpu_custom_call.1} parent=5 // pred_region
        // Predicated region
        $region25: #{tpu_custom_call.1} parent=23 // pred_check
          %p146 = pneg %p58
        $region26: #{tpu_custom_call.1} parent=23 // pred_check_branch
          %148 = sbr.rel (%p146) target = $region28
        $region27: #{tpu_custom_call.1} parent=23 // pred_region
          %s149 = sand.u32 %s48, 1
          %s150 = scalar_lea.sflag [#allocation4], %s149
          %s151 = sand.u32 %s48, 1
          %s152 = smul.addr %s151, 16
          %s153 = scalar_lea.vmem [#allocation3], %s152
          %s154 = smul.u32 2, %s17
          %s156 = ssub.s32 256, 256
          %157 = vsyncadd %s150, %s156
          %s158 = smul.addr %s154, 128
          %s159 = scalar_lea.hbm %s1, %s158
          %s160 = sshll.u32 %s153, 4
          %s161 = int_to_ptr.vmem [resolvable:$true] %s160
          %166 = dma.hbm_to_vmem [thread:$0]  %s159, 256, %s161, %s150, 128, 128, 8
        $region28: #{tpu_custom_call.1} parent=23 // pred_fallthru
          _
      $region24: #{tpu_custom_call.1} parent=5 // pred_fallthru
        _
      %p167 = scmp.le.s32.totalorder 1, %s17
      %p168 = scmp.lt.s32.totalorder %s17, 3
      %p169 = pnand %p167, %p168
      %p170 = pneg %p169
      // Predicated region
      $region29: #{tpu_custom_call.1} parent=5 // pred_check
        _
      $region30: #{tpu_custom_call.1} parent=5 // pred_check_branch
        %172 = sbr.rel (%p169) target = $region32
      $region31: #{tpu_custom_call.1} parent=5 // pred_region
        %s173 = ssub.s32 %s17, 1
        %s174 = sand.u32 %s51, 1
        %s175 = scalar_lea.sflag [#allocation4], %s174
        %s176 = sand.u32 %s51, 1
        %s177 = smul.addr %s176, 16
        %s178 = scalar_lea.vmem [#allocation3], %s177
        // Predicated region
        $region33: #{tpu_custom_call.1} parent=31 // pred_check
          %p179 = pneg %p64
        $region34: #{tpu_custom_call.1} parent=31 // pred_check_branch
          %181 = sbr.rel (%p179) target = $region36
        $region35: #{tpu_custom_call.1} parent=31 // pred_region
          %182 = dma.done %s175, 256
        $region36: #{tpu_custom_call.1} parent=31 // pred_fallthru
          _
        // Predicated region
        $region37: #{tpu_custom_call.1} parent=31 // pred_check
          %p183 = pneg %p85
        $region38: #{tpu_custom_call.1} parent=31 // pred_check_branch
          %185 = sbr.rel (%p183) target = $region40
        $region39: #{tpu_custom_call.1} parent=31 // pred_region
          %186 = dma.done [#allocation7], 2048
        $region40: #{tpu_custom_call.1} parent=31 // pred_fallthru
          _
        %p187 = pneg %p38
        %p188 = pneg %p35
        %s189 = sand.u32 %s51, 1
        %s190 = scalar_lea.sflag [#allocation4], %s189
        %s191 = sand.u32 %s51, 1
        %s192 = smul.addr %s191, 16
        %s193 = scalar_lea.vmem [#allocation3], %s192
        %p194 = pneg %p64
        %p195 = pneg %p61
        %p196 = pneg %p85
        %p197 = pneg %p82
        %p198 = pneg %p111
        %p199 = pneg %p108
        %s200 = sand.u32 %s98, 1
        %s201 = scalar_lea.sflag [#allocation5], %s200
        %s202 = sand.u32 %s98, 1
        %s203 = smul.addr %s202, 32
        %s204 = scalar_lea.vmem [#allocation8], %s203
        %s205 = smul.u32 2, %s22
        %s206 = smul.u32 2, %s22
        %v207 = vld [vmem:[%s178] sm:$0xff]
        %v208 = vld [vmem:[%s178 + $0x8] sm:$0xff]
        %v209 = vld [vmem:[#allocation6] sm:$0xff]
        %v210 = vld [vmem:[#allocation6 + $0x8] sm:$0xff]
        %v211 = vld [vmem:[#allocation6 + $0x10] sm:$0xff]
        %v212 = vld [vmem:[#allocation6 + $0x18] sm:$0xff]
        %v213 = vld [vmem:[#allocation6 + $0x20] sm:$0xff]
        %v214 = vld [vmem:[#allocation6 + $0x28] sm:$0xff]
        %v215 = vld [vmem:[#allocation6 + $0x30] sm:$0xff]
        %v216 = vld [vmem:[#allocation6 + $0x38] sm:$0xff]
        %v217 = vld [vmem:[#allocation6 + $0x40] sm:$0xff]
        %v218 = vld [vmem:[#allocation6 + $0x48] sm:$0xff]
        %v219 = vld [vmem:[#allocation6 + $0x50] sm:$0xff]
        %v220 = vld [vmem:[#allocation6 + $0x58] sm:$0xff]
        %v221 = vld [vmem:[#allocation6 + $0x60] sm:$0xff]
        %v222 = vld [vmem:[#allocation6 + $0x68] sm:$0xff]
        %v223 = vld [vmem:[#allocation6 + $0x70] sm:$0xff]
        %v224 = vld [vmem:[#allocation6 + $0x78] sm:$0xff]
        %vm225 = vcmask 523264
        %v227 = vsel %vm225, %v207, 0
        %v230 = vsel %vm225, %v208, 0
        %232 = vmatprep.subr.mxu0 0.0
        %233 = vmatpush1.msra.mxu0 0.0
        %234 = vmatprep.subr.mxu0 0.0
        %235 = vmatpush1.msra.mxu0 0.0
        %236 = vmatprep.subr.mxu0 0.0
        %237 = vmatpush1.msra.mxu0 0.0
        %238 = vmatprep.subr.mxu0 0.0
        %239 = vmatpush1.msra.mxu0 0.0
        %240 = vmatprep.subr.mxu0 0.0
        %241 = vmatpush1.msra.mxu0 0.0
        %242 = vmatprep.subr.mxu0 0.0
        %243 = vmatpush1.msra.mxu0 0.0
        %244 = vmatprep.subr.mxu0 0.0
        %245 = vmatpush1.msra.mxu0 0.0
        %246 = vmatprep.subr.mxu0 0.0
        %247 = vmatpush1.msra.mxu0 0.0
        %v248 = vand.u32 %v224, 4294901760
        %249 = vmatprep.subr.mxu0 %v248
        %v250 = vand.u32 %v223, 4294901760
        %251 = vmatpush1.msra.mxu0 %v250
        %v252 = vand.u32 %v222, 4294901760
        %253 = vmatprep.subr.mxu0 %v252
        %v254 = vand.u32 %v221, 4294901760
        %255 = vmatpush1.msra.mxu0 %v254
        %v256 = vand.u32 %v220, 4294901760
        %257 = vmatprep.subr.mxu0 %v256
        %v258 = vand.u32 %v219, 4294901760
        %259 = vmatpush1.msra.mxu0 %v258
        %v260 = vand.u32 %v218, 4294901760
        %261 = vmatprep.subr.mxu0 %v260
        %v262 = vand.u32 %v217, 4294901760
        %263 = vmatpush1.msra.mxu0 %v262
        %v264 = vand.u32 %v216, 4294901760
        %265 = vmatprep.subr.mxu0 %v264
        %v266 = vand.u32 %v215, 4294901760
        %267 = vmatpush1.msra.mxu0 %v266
        %v268 = vand.u32 %v214, 4294901760
        %269 = vmatprep.subr.mxu0 %v268
        %v270 = vand.u32 %v213, 4294901760
        %271 = vmatpush1.msra.mxu0 %v270
        %v272 = vand.u32 %v212, 4294901760
        %273 = vmatprep.subr.mxu0 %v272
        %v274 = vand.u32 %v211, 4294901760
        %275 = vmatpush1.msra.mxu0 %v274
        %v276 = vand.u32 %v210, 4294901760
        %277 = vmatprep.subr.mxu0 %v276
        %v278 = vand.u32 %v209, 4294901760
        %279 = vmatpush1.msra.mxu0 %v278
        %280 = vmatprep.subr.mxu0 0.0
        %281 = vmatpush2.msra.mxu0 0.0
        %282 = vmatprep.subr.mxu0 0.0
        %283 = vmatpush2.msra.mxu0 0.0
        %284 = vmatprep.subr.mxu0 0.0
        %285 = vmatpush2.msra.mxu0 0.0
        %286 = vmatprep.subr.mxu0 0.0
        %287 = vmatpush2.msra.mxu0 0.0
        %288 = vmatprep.subr.mxu0 0.0
        %289 = vmatpush2.msra.mxu0 0.0
        %290 = vmatprep.subr.mxu0 0.0
        %291 = vmatpush2.msra.mxu0 0.0
        %292 = vmatprep.subr.mxu0 0.0
        %293 = vmatpush2.msra.mxu0 0.0
        %294 = vmatprep.subr.mxu0 0.0
        %295 = vmatpush2.msra.mxu0 0.0
        %296 = vmatprep.subr.mxu0 0.0
        %297 = vmatpush2.msra.mxu0 0.0
        %298 = vmatprep.subr.mxu0 0.0
        %299 = vmatpush2.msra.mxu0 0.0
        %300 = vmatprep.subr.mxu0 0.0
        %301 = vmatpush2.msra.mxu0 0.0
        %302 = vmatprep.subr.mxu0 0.0
        %303 = vmatpush2.msra.mxu0 0.0
        %304 = vmatprep.subr.mxu0 0.0
        %305 = vmatpush2.msra.mxu0 0.0
        %306 = vmatprep.subr.mxu0 0.0
        %307 = vmatpush2.msra.mxu0 0.0
        %308 = vmatprep.subr.mxu0 0.0
        %309 = vmatpush2.msra.mxu0 0.0
        %310 = vmatprep.subr.mxu0 0.0
        %311 = vmatpush2.msra.mxu0 0.0
        %312 = vmatprep.mubr.f32.mxu0 0.0
        %v313 = vand.u32 %v227, 4294901760
        %v314 = vsub.f32 %v227, %v313
        %v315 = vand.u32 %v314, 4294901760
        %v316 = vsub.f32 %v314, %v315
        %v317 = vand.u32 %v316, 4294901760
        %318 = vmatmul.mubr.f32.gmra.mxu0 %v317
        %v319 = vpop.f32.mrf.mxu0
        %v320 = vadd.f32 0.0, %v319
        %v321 = vpop.f32.mrf.mxu0
        %v322 = vadd.f32 0.0, %v321
        %323 = vmatprep.mubr.f32.mxu0 0.0
        %v324 = vand.u32 %v230, 4294901760
        %v325 = vsub.f32 %v230, %v324
        %v326 = vand.u32 %v325, 4294901760
        %v327 = vsub.f32 %v325, %v326
        %v328 = vand.u32 %v327, 4294901760
        %329 = vmatmul.mubr.f32.gmra.mxu0 %v328
        %v330 = vpop.f32.mrf.mxu0
        %v331 = vadd.f32 0.0, %v330
        %v332 = vpop.f32.mrf.mxu0
        %v333 = vadd.f32 0.0, %v332
        %334 = vdwg.mxu0
        %335 = vmatprep.subr.mxu0 0.0
        %336 = vmatpush1.msra.mxu0 0.0
        %337 = vmatprep.subr.mxu0 0.0
        %338 = vmatpush1.msra.mxu0 0.0
        %339 = vmatprep.subr.mxu0 0.0
        %340 = vmatpush1.msra.mxu0 0.0
        %341 = vmatprep.subr.mxu0 0.0
        %342 = vmatpush1.msra.mxu0 0.0
        %343 = vmatprep.subr.mxu0 0.0
        %344 = vmatpush1.msra.mxu0 0.0
        %345 = vmatprep.subr.mxu0 0.0
        %346 = vmatpush1.msra.mxu0 0.0
        %347 = vmatprep.subr.mxu0 0.0
        %348 = vmatpush1.msra.mxu0 0.0
        %349 = vmatprep.subr.mxu0 0.0
        %350 = vmatpush1.msra.mxu0 0.0
        %v351 = vand.u32 %v224, 4294901760
        %v352 = vsub.f32 %v224, %v351
        %v353 = vand.u32 %v352, 4294901760
        %v354 = vsub.f32 %v352, %v353
        %v355 = vand.u32 %v354, 4294901760
        %356 = vmatprep.subr.mxu0 %v355
        %v357 = vand.u32 %v223, 4294901760
        %v358 = vsub.f32 %v223, %v357
        %v359 = vand.u32 %v358, 4294901760
        %v360 = vsub.f32 %v358, %v359
        %v361 = vand.u32 %v360, 4294901760
        %362 = vmatpush1.msra.mxu0 %v361
        %v363 = vand.u32 %v222, 4294901760
        %v364 = vsub.f32 %v222, %v363
        %v365 = vand.u32 %v364, 4294901760
        %v366 = vsub.f32 %v364, %v365
        %v367 = vand.u32 %v366, 4294901760
        %368 = vmatprep.subr.mxu0 %v367
        %v369 = vand.u32 %v221, 4294901760
        %v370 = vsub.f32 %v221, %v369
        %v371 = vand.u32 %v370, 4294901760
        %v372 = vsub.f32 %v370, %v371
        %v373 = vand.u32 %v372, 4294901760
        %374 = vmatpush1.msra.mxu0 %v373
        %v375 = vand.u32 %v220, 4294901760
        %v376 = vsub.f32 %v220, %v375
        %v377 = vand.u32 %v376, 4294901760
        %v378 = vsub.f32 %v376, %v377
        %v379 = vand.u32 %v378, 4294901760
        %380 = vmatprep.subr.mxu0 %v379
        %v381 = vand.u32 %v219, 4294901760
        %v382 = vsub.f32 %v219, %v381
        %v383 = vand.u32 %v382, 4294901760
        %v384 = vsub.f32 %v382, %v383
        %v385 = vand.u32 %v384, 4294901760
        %386 = vmatpush1.msra.mxu0 %v385
        %v387 = vand.u32 %v218, 4294901760
        %v388 = vsub.f32 %v218, %v387
        %v389 = vand.u32 %v388, 4294901760
        %v390 = vsub.f32 %v388, %v389
        %v391 = vand.u32 %v390, 4294901760
        %392 = vmatprep.subr.mxu0 %v391
        %v393 = vand.u32 %v217, 4294901760
        %v394 = vsub.f32 %v217, %v393
        %v395 = vand.u32 %v394, 4294901760
        %v396 = vsub.f32 %v394, %v395
        %v397 = vand.u32 %v396, 4294901760
        %398 = vmatpush1.msra.mxu0 %v397
        %v399 = vand.u32 %v216, 4294901760
        %v400 = vsub.f32 %v216, %v399
        %v401 = vand.u32 %v400, 4294901760
        %v402 = vsub.f32 %v400, %v401
        %v403 = vand.u32 %v402, 4294901760
        %404 = vmatprep.subr.mxu0 %v403
        %v405 = vand.u32 %v215, 4294901760
        %v406 = vsub.f32 %v215, %v405
        %v407 = vand.u32 %v406, 4294901760
        %v408 = vsub.f32 %v406, %v407
        %v409 = vand.u32 %v408, 4294901760
        %410 = vmatpush1.msra.mxu0 %v409
        %v411 = vand.u32 %v214, 4294901760
        %v412 = vsub.f32 %v214, %v411
        %v413 = vand.u32 %v412, 4294901760
        %v414 = vsub.f32 %v412, %v413
        %v415 = vand.u32 %v414, 4294901760
        %416 = vmatprep.subr.mxu0 %v415
        %v417 = vand.u32 %v213, 4294901760
        %v418 = vsub.f32 %v213, %v417
        %v419 = vand.u32 %v418, 4294901760
        %v420 = vsub.f32 %v418, %v419
        %v421 = vand.u32 %v420, 4294901760
        %422 = vmatpush1.msra.mxu0 %v421
        %v423 = vand.u32 %v212, 4294901760
        %v424 = vsub.f32 %v212, %v423
        %v425 = vand.u32 %v424, 4294901760
        %v426 = vsub.f32 %v424, %v425
        %v427 = vand.u32 %v426, 4294901760
        %428 = vmatprep.subr.mxu0 %v427
        %v429 = vand.u32 %v211, 4294901760
        %v430 = vsub.f32 %v211, %v429
        %v431 = vand.u32 %v430, 4294901760
        %v432 = vsub.f32 %v430, %v431
        %v433 = vand.u32 %v432, 4294901760
        %434 = vmatpush1.msra.mxu0 %v433
        %v435 = vand.u32 %v210, 4294901760
        %v436 = vsub.f32 %v210, %v435
        %v437 = vand.u32 %v436, 4294901760
        %v438 = vsub.f32 %v436, %v437
        %v439 = vand.u32 %v438, 4294901760
        %440 = vmatprep.subr.mxu0 %v439
        %v441 = vand.u32 %v209, 4294901760
        %v442 = vsub.f32 %v209, %v441
        %v443 = vand.u32 %v442, 4294901760
        %v444 = vsub.f32 %v442, %v443
        %v445 = vand.u32 %v444, 4294901760
        %446 = vmatpush1.msra.mxu0 %v445
        %447 = vmatprep.subr.mxu0 0.0
        %448 = vmatpush2.msra.mxu0 0.0
        %449 = vmatprep.subr.mxu0 0.0
        %450 = vmatpush2.msra.mxu0 0.0
        %451 = vmatprep.subr.mxu0 0.0
        %452 = vmatpush2.msra.mxu0 0.0
        %453 = vmatprep.subr.mxu0 0.0
        %454 = vmatpush2.msra.mxu0 0.0
        %455 = vmatprep.subr.mxu0 0.0
        %456 = vmatpush2.msra.mxu0 0.0
        %457 = vmatprep.subr.mxu0 0.0
        %458 = vmatpush2.msra.mxu0 0.0
        %459 = vmatprep.subr.mxu0 0.0
        %460 = vmatpush2.msra.mxu0 0.0
        %461 = vmatprep.subr.mxu0 0.0
        %462 = vmatpush2.msra.mxu0 0.0
        %463 = vmatprep.subr.mxu0 0.0
        %464 = vmatpush2.msra.mxu0 0.0
        %465 = vmatprep.subr.mxu0 0.0
        %466 = vmatpush2.msra.mxu0 0.0
        %467 = vmatprep.subr.mxu0 0.0
        %468 = vmatpush2.msra.mxu0 0.0
        %469 = vmatprep.subr.mxu0 0.0
        %470 = vmatpush2.msra.mxu0 0.0
        %471 = vmatprep.subr.mxu0 0.0
        %472 = vmatpush2.msra.mxu0 0.0
        %473 = vmatprep.subr.mxu0 0.0
        %474 = vmatpush2.msra.mxu0 0.0
        %475 = vmatprep.subr.mxu0 0.0
        %476 = vmatpush2.msra.mxu0 0.0
        %477 = vmatprep.subr.mxu0 0.0
        %478 = vmatpush2.msra.mxu0 0.0
        %479 = vmatprep.mubr.f32.mxu0 0.0
        %v480 = vand.u32 %v227, 4294901760
        %481 = vmatmul.mubr.f32.gmra.mxu0 %v480
        %v482 = vpop.f32.mrf.mxu0
        %v483 = vadd.f32 %v320, %v482
        %v484 = vpop.f32.mrf.mxu0
        %v485 = vadd.f32 %v322, %v484
        %486 = vmatprep.mubr.f32.mxu0 0.0
        %v487 = vand.u32 %v230, 4294901760
        %488 = vmatmul.mubr.f32.gmra.mxu0 %v487
        %v489 = vpop.f32.mrf.mxu0
        %v490 = vadd.f32 %v331, %v489
        %v491 = vpop.f32.mrf.mxu0
        %v492 = vadd.f32 %v333, %v491
        %493 = vdwg.mxu0
        %494 = vmatprep.subr.mxu0 0.0
        %495 = vmatpush1.msra.mxu0 0.0
        %496 = vmatprep.subr.mxu0 0.0
        %497 = vmatpush1.msra.mxu0 0.0
        %498 = vmatprep.subr.mxu0 0.0
        %499 = vmatpush1.msra.mxu0 0.0
        %500 = vmatprep.subr.mxu0 0.0
        %501 = vmatpush1.msra.mxu0 0.0
        %502 = vmatprep.subr.mxu0 0.0
        %503 = vmatpush1.msra.mxu0 0.0
        %504 = vmatprep.subr.mxu0 0.0
        %505 = vmatpush1.msra.mxu0 0.0
        %506 = vmatprep.subr.mxu0 0.0
        %507 = vmatpush1.msra.mxu0 0.0
        %508 = vmatprep.subr.mxu0 0.0
        %509 = vmatpush1.msra.mxu0 0.0
        %v510 = vand.u32 %v224, 4294901760
        %v511 = vsub.f32 %v224, %v510
        %512 = vmatprep.subr.mxu0 %v511
        %v513 = vand.u32 %v223, 4294901760
        %v514 = vsub.f32 %v223, %v513
        %515 = vmatpush1.msra.mxu0 %v514
        %v516 = vand.u32 %v222, 4294901760
        %v517 = vsub.f32 %v222, %v516
        %518 = vmatprep.subr.mxu0 %v517
        %v519 = vand.u32 %v221, 4294901760
        %v520 = vsub.f32 %v221, %v519
        %521 = vmatpush1.msra.mxu0 %v520
        %v522 = vand.u32 %v220, 4294901760
        %v523 = vsub.f32 %v220, %v522
        %524 = vmatprep.subr.mxu0 %v523
        %v525 = vand.u32 %v219, 4294901760
        %v526 = vsub.f32 %v219, %v525
        %527 = vmatpush1.msra.mxu0 %v526
        %v528 = vand.u32 %v218, 4294901760
        %v529 = vsub.f32 %v218, %v528
        %530 = vmatprep.subr.mxu0 %v529
        %v531 = vand.u32 %v217, 4294901760
        %v532 = vsub.f32 %v217, %v531
        %533 = vmatpush1.msra.mxu0 %v532
        %v534 = vand.u32 %v216, 4294901760
        %v535 = vsub.f32 %v216, %v534
        %536 = vmatprep.subr.mxu0 %v535
        %v537 = vand.u32 %v215, 4294901760
        %v538 = vsub.f32 %v215, %v537
        %539 = vmatpush1.msra.mxu0 %v538
        %v540 = vand.u32 %v214, 4294901760
        %v541 = vsub.f32 %v214, %v540
        %542 = vmatprep.subr.mxu0 %v541
        %v543 = vand.u32 %v213, 4294901760
        %v544 = vsub.f32 %v213, %v543
        %545 = vmatpush1.msra.mxu0 %v544
        %v546 = vand.u32 %v212, 4294901760
        %v547 = vsub.f32 %v212, %v546
        %548 = vmatprep.subr.mxu0 %v547
        %v549 = vand.u32 %v211, 4294901760
        %v550 = vsub.f32 %v211, %v549
        %551 = vmatpush1.msra.mxu0 %v550
        %v552 = vand.u32 %v210, 4294901760
        %v553 = vsub.f32 %v210, %v552
        %554 = vmatprep.subr.mxu0 %v553
        %v555 = vand.u32 %v209, 4294901760
        %v556 = vsub.f32 %v209, %v555
        %557 = vmatpush1.msra.mxu0 %v556
        %558 = vmatprep.subr.mxu0 0.0
        %559 = vmatpush2.msra.mxu0 0.0
        %560 = vmatprep.subr.mxu0 0.0
        %561 = vmatpush2.msra.mxu0 0.0
        %562 = vmatprep.subr.mxu0 0.0
        %563 = vmatpush2.msra.mxu0 0.0
        %564 = vmatprep.subr.mxu0 0.0
        %565 = vmatpush2.msra.mxu0 0.0
        %566 = vmatprep.subr.mxu0 0.0
        %567 = vmatpush2.msra.mxu0 0.0
        %568 = vmatprep.subr.mxu0 0.0
        %569 = vmatpush2.msra.mxu0 0.0
        %570 = vmatprep.subr.mxu0 0.0
        %571 = vmatpush2.msra.mxu0 0.0
        %572 = vmatprep.subr.mxu0 0.0
        %573 = vmatpush2.msra.mxu0 0.0
        %574 = vmatprep.subr.mxu0 0.0
        %575 = vmatpush2.msra.mxu0 0.0
        %576 = vmatprep.subr.mxu0 0.0
        %577 = vmatpush2.msra.mxu0 0.0
        %578 = vmatprep.subr.mxu0 0.0
        %579 = vmatpush2.msra.mxu0 0.0
        %580 = vmatprep.subr.mxu0 0.0
        %581 = vmatpush2.msra.mxu0 0.0
        %582 = vmatprep.subr.mxu0 0.0
        %583 = vmatpush2.msra.mxu0 0.0
        %584 = vmatprep.subr.mxu0 0.0
        %585 = vmatpush2.msra.mxu0 0.0
        %586 = vmatprep.subr.mxu0 0.0
        %587 = vmatpush2.msra.mxu0 0.0
        %588 = vmatprep.subr.mxu0 0.0
        %589 = vmatpush2.msra.mxu0 0.0
        %590 = vmatprep.mubr.f32.mxu0 0.0
        %v591 = vand.u32 %v227, 4294901760
        %v592 = vsub.f32 %v227, %v591
        %593 = vmatmul.mubr.f32.gmra.mxu0 %v592
        %v594 = vpop.f32.mrf.mxu0
        %v595 = vadd.f32 %v483, %v594
        %v596 = vpop.f32.mrf.mxu0
        %v597 = vadd.f32 %v485, %v596
        %598 = vmatprep.mubr.f32.mxu0 0.0
        %v599 = vand.u32 %v230, 4294901760
        %v600 = vsub.f32 %v230, %v599
        %601 = vmatmul.mubr.f32.gmra.mxu0 %v600
        %v602 = vpop.f32.mrf.mxu0
        %v603 = vadd.f32 %v490, %v602
        %v604 = vpop.f32.mrf.mxu0
        %v605 = vadd.f32 %v492, %v604
        %606 = vdwg.mxu0
        %607 = vmatprep.subr.mxu0 0.0
        %608 = vmatpush1.msra.mxu0 0.0
        %609 = vmatprep.subr.mxu0 0.0
        %610 = vmatpush1.msra.mxu0 0.0
        %611 = vmatprep.subr.mxu0 0.0
        %612 = vmatpush1.msra.mxu0 0.0
        %613 = vmatprep.subr.mxu0 0.0
        %614 = vmatpush1.msra.mxu0 0.0
        %615 = vmatprep.subr.mxu0 0.0
        %616 = vmatpush1.msra.mxu0 0.0
        %617 = vmatprep.subr.mxu0 0.0
        %618 = vmatpush1.msra.mxu0 0.0
        %619 = vmatprep.subr.mxu0 0.0
        %620 = vmatpush1.msra.mxu0 0.0
        %621 = vmatprep.subr.mxu0 0.0
        %622 = vmatpush1.msra.mxu0 0.0
        %v623 = vand.u32 %v224, 4294901760
        %624 = vmatprep.subr.mxu0 %v623
        %v625 = vand.u32 %v223, 4294901760
        %626 = vmatpush1.msra.mxu0 %v625
        %v627 = vand.u32 %v222, 4294901760
        %628 = vmatprep.subr.mxu0 %v627
        %v629 = vand.u32 %v221, 4294901760
        %630 = vmatpush1.msra.mxu0 %v629
        %v631 = vand.u32 %v220, 4294901760
        %632 = vmatprep.subr.mxu0 %v631
        %v633 = vand.u32 %v219, 4294901760
        %634 = vmatpush1.msra.mxu0 %v633
        %v635 = vand.u32 %v218, 4294901760
        %636 = vmatprep.subr.mxu0 %v635
        %v637 = vand.u32 %v217, 4294901760
        %638 = vmatpush1.msra.mxu0 %v637
        %v639 = vand.u32 %v216, 4294901760
        %640 = vmatprep.subr.mxu0 %v639
        %v641 = vand.u32 %v215, 4294901760
        %642 = vmatpush1.msra.mxu0 %v641
        %v643 = vand.u32 %v214, 4294901760
        %644 = vmatprep.subr.mxu0 %v643
        %v645 = vand.u32 %v213, 4294901760
        %646 = vmatpush1.msra.mxu0 %v645
        %v647 = vand.u32 %v212, 4294901760
        %648 = vmatprep.subr.mxu0 %v647
        %v649 = vand.u32 %v211, 4294901760
        %650 = vmatpush1.msra.mxu0 %v649
        %v651 = vand.u32 %v210, 4294901760
        %652 = vmatprep.subr.mxu0 %v651
        %v653 = vand.u32 %v209, 4294901760
        %654 = vmatpush1.msra.mxu0 %v653
        %655 = vmatprep.subr.mxu0 0.0
        %656 = vmatpush2.msra.mxu0 0.0
        %657 = vmatprep.subr.mxu0 0.0
        %658 = vmatpush2.msra.mxu0 0.0
        %659 = vmatprep.subr.mxu0 0.0
        %660 = vmatpush2.msra.mxu0 0.0
        %661 = vmatprep.subr.mxu0 0.0
        %662 = vmatpush2.msra.mxu0 0.0
        %663 = vmatprep.subr.mxu0 0.0
        %664 = vmatpush2.msra.mxu0 0.0
        %665 = vmatprep.subr.mxu0 0.0
        %666 = vmatpush2.msra.mxu0 0.0
        %667 = vmatprep.subr.mxu0 0.0
        %668 = vmatpush2.msra.mxu0 0.0
        %669 = vmatprep.subr.mxu0 0.0
        %670 = vmatpush2.msra.mxu0 0.0
        %671 = vmatprep.subr.mxu0 0.0
        %672 = vmatpush2.msra.mxu0 0.0
        %673 = vmatprep.subr.mxu0 0.0
        %674 = vmatpush2.msra.mxu0 0.0
        %675 = vmatprep.subr.mxu0 0.0
        %676 = vmatpush2.msra.mxu0 0.0
        %677 = vmatprep.subr.mxu0 0.0
        %678 = vmatpush2.msra.mxu0 0.0
        %679 = vmatprep.subr.mxu0 0.0
        %680 = vmatpush2.msra.mxu0 0.0
        %681 = vmatprep.subr.mxu0 0.0
        %682 = vmatpush2.msra.mxu0 0.0
        %683 = vmatprep.subr.mxu0 0.0
        %684 = vmatpush2.msra.mxu0 0.0
        %685 = vmatprep.subr.mxu0 0.0
        %686 = vmatpush2.msra.mxu0 0.0
        %687 = vmatprep.mubr.f32.mxu0 0.0
        %v688 = vand.u32 %v227, 4294901760
        %v689 = vsub.f32 %v227, %v688
        %v690 = vand.u32 %v689, 4294901760
        %691 = vmatmul.mubr.f32.gmra.mxu0 %v690
        %v692 = vpop.f32.mrf.mxu0
        %v693 = vadd.f32 %v595, %v692
        %v694 = vpop.f32.mrf.mxu0
        %v695 = vadd.f32 %v597, %v694
        %696 = vmatprep.mubr.f32.mxu0 0.0
        %v697 = vand.u32 %v230, 4294901760
        %v698 = vsub.f32 %v230, %v697
        %v699 = vand.u32 %v698, 4294901760
        %700 = vmatmul.mubr.f32.gmra.mxu0 %v699
        %v701 = vpop.f32.mrf.mxu0
        %v702 = vadd.f32 %v603, %v701
        %v703 = vpop.f32.mrf.mxu0
        %v704 = vadd.f32 %v605, %v703
        %705 = vdwg.mxu0
        %706 = vmatprep.subr.mxu0 0.0
        %707 = vmatpush1.msra.mxu0 0.0
        %708 = vmatprep.subr.mxu0 0.0
        %709 = vmatpush1.msra.mxu0 0.0
        %710 = vmatprep.subr.mxu0 0.0
        %711 = vmatpush1.msra.mxu0 0.0
        %712 = vmatprep.subr.mxu0 0.0
        %713 = vmatpush1.msra.mxu0 0.0
        %714 = vmatprep.subr.mxu0 0.0
        %715 = vmatpush1.msra.mxu0 0.0
        %716 = vmatprep.subr.mxu0 0.0
        %717 = vmatpush1.msra.mxu0 0.0
        %718 = vmatprep.subr.mxu0 0.0
        %719 = vmatpush1.msra.mxu0 0.0
        %720 = vmatprep.subr.mxu0 0.0
        %721 = vmatpush1.msra.mxu0 0.0
        %v722 = vand.u32 %v224, 4294901760
        %v723 = vsub.f32 %v224, %v722
        %v724 = vand.u32 %v723, 4294901760
        %725 = vmatprep.subr.mxu0 %v724
        %v726 = vand.u32 %v223, 4294901760
        %v727 = vsub.f32 %v223, %v726
        %v728 = vand.u32 %v727, 4294901760
        %729 = vmatpush1.msra.mxu0 %v728
        %v730 = vand.u32 %v222, 4294901760
        %v731 = vsub.f32 %v222, %v730
        %v732 = vand.u32 %v731, 4294901760
        %733 = vmatprep.subr.mxu0 %v732
        %v734 = vand.u32 %v221, 4294901760
        %v735 = vsub.f32 %v221, %v734
        %v736 = vand.u32 %v735, 4294901760
        %737 = vmatpush1.msra.mxu0 %v736
        %v738 = vand.u32 %v220, 4294901760
        %v739 = vsub.f32 %v220, %v738
        %v740 = vand.u32 %v739, 4294901760
        %741 = vmatprep.subr.mxu0 %v740
        %v742 = vand.u32 %v219, 4294901760
        %v743 = vsub.f32 %v219, %v742
        %v744 = vand.u32 %v743, 4294901760
        %745 = vmatpush1.msra.mxu0 %v744
        %v746 = vand.u32 %v218, 4294901760
        %v747 = vsub.f32 %v218, %v746
        %v748 = vand.u32 %v747, 4294901760
        %749 = vmatprep.subr.mxu0 %v748
        %v750 = vand.u32 %v217, 4294901760
        %v751 = vsub.f32 %v217, %v750
        %v752 = vand.u32 %v751, 4294901760
        %753 = vmatpush1.msra.mxu0 %v752
        %v754 = vand.u32 %v216, 4294901760
        %v755 = vsub.f32 %v216, %v754
        %v756 = vand.u32 %v755, 4294901760
        %757 = vmatprep.subr.mxu0 %v756
        %v758 = vand.u32 %v215, 4294901760
        %v759 = vsub.f32 %v215, %v758
        %v760 = vand.u32 %v759, 4294901760
        %761 = vmatpush1.msra.mxu0 %v760
        %v762 = vand.u32 %v214, 4294901760
        %v763 = vsub.f32 %v214, %v762
        %v764 = vand.u32 %v763, 4294901760
        %765 = vmatprep.subr.mxu0 %v764
        %v766 = vand.u32 %v213, 4294901760
        %v767 = vsub.f32 %v213, %v766
        %v768 = vand.u32 %v767, 4294901760
        %769 = vmatpush1.msra.mxu0 %v768
        %v770 = vand.u32 %v212, 4294901760
        %v771 = vsub.f32 %v212, %v770
        %v772 = vand.u32 %v771, 4294901760
        %773 = vmatprep.subr.mxu0 %v772
        %v774 = vand.u32 %v211, 4294901760
        %v775 = vsub.f32 %v211, %v774
        %v776 = vand.u32 %v775, 4294901760
        %777 = vmatpush1.msra.mxu0 %v776
        %v778 = vand.u32 %v210, 4294901760
        %v779 = vsub.f32 %v210, %v778
        %v780 = vand.u32 %v779, 4294901760
        %781 = vmatprep.subr.mxu0 %v780
        %v782 = vand.u32 %v209, 4294901760
        %v783 = vsub.f32 %v209, %v782
        %v784 = vand.u32 %v783, 4294901760
        %785 = vmatpush1.msra.mxu0 %v784
        %786 = vmatprep.subr.mxu0 0.0
        %787 = vmatpush2.msra.mxu0 0.0
        %788 = vmatprep.subr.mxu0 0.0
        %789 = vmatpush2.msra.mxu0 0.0
        %790 = vmatprep.subr.mxu0 0.0
        %791 = vmatpush2.msra.mxu0 0.0
        %792 = vmatprep.subr.mxu0 0.0
        %793 = vmatpush2.msra.mxu0 0.0
        %794 = vmatprep.subr.mxu0 0.0
        %795 = vmatpush2.msra.mxu0 0.0
        %796 = vmatprep.subr.mxu0 0.0
        %797 = vmatpush2.msra.mxu0 0.0
        %798 = vmatprep.subr.mxu0 0.0
        %799 = vmatpush2.msra.mxu0 0.0
        %800 = vmatprep.subr.mxu0 0.0
        %801 = vmatpush2.msra.mxu0 0.0
        %802 = vmatprep.subr.mxu0 0.0
        %803 = vmatpush2.msra.mxu0 0.0
        %804 = vmatprep.subr.mxu0 0.0
        %805 = vmatpush2.msra.mxu0 0.0
        %806 = vmatprep.subr.mxu0 0.0
        %807 = vmatpush2.msra.mxu0 0.0
        %808 = vmatprep.subr.mxu0 0.0
        %809 = vmatpush2.msra.mxu0 0.0
        %810 = vmatprep.subr.mxu0 0.0
        %811 = vmatpush2.msra.mxu0 0.0
        %812 = vmatprep.subr.mxu0 0.0
        %813 = vmatpush2.msra.mxu0 0.0
        %814 = vmatprep.subr.mxu0 0.0
        %815 = vmatpush2.msra.mxu0 0.0
        %816 = vmatprep.subr.mxu0 0.0
        %817 = vmatpush2.msra.mxu0 0.0
        %818 = vmatprep.mubr.f32.mxu0 0.0
        %v819 = vand.u32 %v227, 4294901760
        %820 = vmatmul.mubr.f32.gmra.mxu0 %v819
        %v821 = vpop.f32.mrf.mxu0
        %v822 = vadd.f32 %v693, %v821
        %v823 = vpop.f32.mrf.mxu0
        %v824 = vadd.f32 %v695, %v823
        %825 = vmatprep.mubr.f32.mxu0 0.0
        %v826 = vand.u32 %v230, 4294901760
        %827 = vmatmul.mubr.f32.gmra.mxu0 %v826
        %v828 = vpop.f32.mrf.mxu0
        %v829 = vadd.f32 %v702, %v828
        %v830 = vpop.f32.mrf.mxu0
        %v831 = vadd.f32 %v704, %v830
        %832 = vdwg.mxu0
        %833 = vmatprep.subr.mxu0 0.0
        %834 = vmatpush1.msra.mxu0 0.0
        %835 = vmatprep.subr.mxu0 0.0
        %836 = vmatpush1.msra.mxu0 0.0
        %837 = vmatprep.subr.mxu0 0.0
        %838 = vmatpush1.msra.mxu0 0.0
        %839 = vmatprep.subr.mxu0 0.0
        %840 = vmatpush1.msra.mxu0 0.0
        %841 = vmatprep.subr.mxu0 0.0
        %842 = vmatpush1.msra.mxu0 0.0
        %843 = vmatprep.subr.mxu0 0.0
        %844 = vmatpush1.msra.mxu0 0.0
        %845 = vmatprep.subr.mxu0 0.0
        %846 = vmatpush1.msra.mxu0 0.0
        %847 = vmatprep.subr.mxu0 0.0
        %848 = vmatpush1.msra.mxu0 0.0
        %v849 = vand.u32 %v224, 4294901760
        %850 = vmatprep.subr.mxu0 %v849
        %v851 = vand.u32 %v223, 4294901760
        %852 = vmatpush1.msra.mxu0 %v851
        %v853 = vand.u32 %v222, 4294901760
        %854 = vmatprep.subr.mxu0 %v853
        %v855 = vand.u32 %v221, 4294901760
        %856 = vmatpush1.msra.mxu0 %v855
        %v857 = vand.u32 %v220, 4294901760
        %858 = vmatprep.subr.mxu0 %v857
        %v859 = vand.u32 %v219, 4294901760
        %860 = vmatpush1.msra.mxu0 %v859
        %v861 = vand.u32 %v218, 4294901760
        %862 = vmatprep.subr.mxu0 %v861
        %v863 = vand.u32 %v217, 4294901760
        %864 = vmatpush1.msra.mxu0 %v863
        %v865 = vand.u32 %v216, 4294901760
        %866 = vmatprep.subr.mxu0 %v865
        %v867 = vand.u32 %v215, 4294901760
        %868 = vmatpush1.msra.mxu0 %v867
        %v869 = vand.u32 %v214, 4294901760
        %870 = vmatprep.subr.mxu0 %v869
        %v871 = vand.u32 %v213, 4294901760
        %872 = vmatpush1.msra.mxu0 %v871
        %v873 = vand.u32 %v212, 4294901760
        %874 = vmatprep.subr.mxu0 %v873
        %v875 = vand.u32 %v211, 4294901760
        %876 = vmatpush1.msra.mxu0 %v875
        %v877 = vand.u32 %v210, 4294901760
        %878 = vmatprep.subr.mxu0 %v877
        %v879 = vand.u32 %v209, 4294901760
        %880 = vmatpush1.msra.mxu0 %v879
        %881 = vmatprep.subr.mxu0 0.0
        %882 = vmatpush2.msra.mxu0 0.0
        %883 = vmatprep.subr.mxu0 0.0
        %884 = vmatpush2.msra.mxu0 0.0
        %885 = vmatprep.subr.mxu0 0.0
        %886 = vmatpush2.msra.mxu0 0.0
        %887 = vmatprep.subr.mxu0 0.0
        %888 = vmatpush2.msra.mxu0 0.0
        %889 = vmatprep.subr.mxu0 0.0
        %890 = vmatpush2.msra.mxu0 0.0
        %891 = vmatprep.subr.mxu0 0.0
        %892 = vmatpush2.msra.mxu0 0.0
        %893 = vmatprep.subr.mxu0 0.0
        %894 = vmatpush2.msra.mxu0 0.0
        %895 = vmatprep.subr.mxu0 0.0
        %896 = vmatpush2.msra.mxu0 0.0
        %897 = vmatprep.subr.mxu0 0.0
        %898 = vmatpush2.msra.mxu0 0.0
        %899 = vmatprep.subr.mxu0 0.0
        %900 = vmatpush2.msra.mxu0 0.0
        %901 = vmatprep.subr.mxu0 0.0
        %902 = vmatpush2.msra.mxu0 0.0
        %903 = vmatprep.subr.mxu0 0.0
        %904 = vmatpush2.msra.mxu0 0.0
        %905 = vmatprep.subr.mxu0 0.0
        %906 = vmatpush2.msra.mxu0 0.0
        %907 = vmatprep.subr.mxu0 0.0
        %908 = vmatpush2.msra.mxu0 0.0
        %909 = vmatprep.subr.mxu0 0.0
        %910 = vmatpush2.msra.mxu0 0.0
        %911 = vmatprep.subr.mxu0 0.0
        %912 = vmatpush2.msra.mxu0 0.0
        %913 = vmatprep.mubr.f32.mxu0 0.0
        %v914 = vand.u32 %v227, 4294901760
        %915 = vmatmul.mubr.f32.gmra.mxu0 %v914
        %v916 = vpop.f32.mrf.mxu0
        %v917 = vadd.f32 %v822, %v916
        %v918 = vpop.f32.mrf.mxu0
        %v919 = vadd.f32 %v824, %v918
        %920 = vmatprep.mubr.f32.mxu0 0.0
        %v921 = vand.u32 %v230, 4294901760
        %922 = vmatmul.mubr.f32.gmra.mxu0 %v921
        %v923 = vpop.f32.mrf.mxu0
        %v924 = vadd.f32 %v829, %v923
        %v925 = vpop.f32.mrf.mxu0
        %v926 = vadd.f32 %v831, %v925
        %927 = vdwg.mxu0
        %s928 = sld [smem:[#allocation2]]
        %v929 = vstv %s928
        %v930 = vmul.f32 %v917, %v929
        %v931 = vmul.f32 %v919, %v929
        %v932 = vmul.f32 %v924, %v929
        %v933 = vmul.f32 %v926, %v929
        %934 = vst [vmem:[%s204] sm:$0xff] %v930
        %935 = vst [vmem:[%s204 + $0x8] sm:$0xff] %v931
        %936 = vst [vmem:[%s204 + $0x10] sm:$0xff] %v932
        %937 = vst [vmem:[%s204 + $0x18] sm:$0xff] %v933
        %s938 = sand.u32 %s98, 1
        %s939 = scalar_lea.sflag [#allocation5], %s938
        %s940 = sand.u32 %s98, 1
        %s941 = smul.addr %s940, 32
        %s942 = scalar_lea.vmem [#allocation8], %s941
        // Predicated region
        $region41: #{tpu_custom_call.1} parent=31 // pred_check
          %p943 = pneg %p108
        $region42: #{tpu_custom_call.1} parent=31 // pred_check_branch
          %945 = sbr.rel (%p943) target = $region44
        $region43: #{tpu_custom_call.1} parent=31 // pred_region
          %s946 = smul.u32 2, %s22
          %s948 = ssub.s32 512, 512
          %949 = vsyncadd %s939, %s948
          %s950 = smul.addr %s946, 2
          %s951 = smul.addr %s950, 128
          %s952 = scalar_lea.hbm %s3, %s951
          %s953 = sshll.u32 %s942, 4
          %s954 = int_to_ptr.vmem [resolvable:$true] %s953
          %959 = dma.vmem_to_hbm [thread:$0]  %s954, 512, %s952, %s939, 256, 256, 16
        $region44: #{tpu_custom_call.1} parent=31 // pred_fallthru
          _
      $region32: #{tpu_custom_call.1} parent=5 // pred_fallthru
        _
      %p960 = scmp.le.s32.totalorder 2, %s17
      // Predicated region
      $region45: #{tpu_custom_call.1} parent=5 // pred_check
        %p961 = pneg %p960
      $region46: #{tpu_custom_call.1} parent=5 // pred_check_branch
        %963 = sbr.rel (%p961) target = $region48
      $region47: #{tpu_custom_call.1} parent=5 // pred_region
        %s964 = ssub.s32 %s17, 2
        // Predicated region
        $region49: #{tpu_custom_call.1} parent=47 // pred_check
          %p965 = pneg %p114
        $region50: #{tpu_custom_call.1} parent=47 // pred_check_branch
          %967 = sbr.rel (%p965) target = $region52
        $region51: #{tpu_custom_call.1} parent=47 // pred_region
          %s968 = sand.u32 %s99, 1
          %s969 = scalar_lea.sflag [#allocation5], %s968
          %s970 = sand.u32 %s99, 1
          %s971 = smul.addr %s970, 32
          %s972 = scalar_lea.vmem [#allocation8], %s971
          %973 = dma.done %s969, 512
        $region52: #{tpu_custom_call.1} parent=47 // pred_fallthru
          _
      $region48: #{tpu_custom_call.1} parent=5 // pred_fallthru
        _
    $region6: #{tpu_custom_call.1} parent=1 // loop_footer
      %s21 = sadd.s32 1, %s17
    $region7: #{tpu_custom_call.1} parent=1 // loop_footer_branch
      %16 = sbr.rel target = $region3
    $region8: #{tpu_custom_call.1} parent=1 // loop_exit
      _
    %974 = vsyncpa [#allocation4], 1
    %s975 = scalar_lea.sflag [#allocation4], 1
    %976 = vsyncpa %s975, 1
    %977 = vsyncpa [#allocation7], 1
    %978 = vsyncpa [#allocation5], 1
    %s979 = scalar_lea.sflag [#allocation5], 1
    %980 = vsyncpa %s979, 1

</llo_original>
